<compile_context>
chip_gen: v7x
topology: tpu7x:2x2x1
jax: 0.10.0
libtpu: 0.0.40
codegen_flags: <defaults>
</compile_context>

<pallas_src>
import functools

import jax
import jax.numpy as jnp
from jax import lax
from jax.experimental import pallas as pl
from jax.experimental.pallas import tpu as pltpu


_LANES = 128
# 2048 rows x 128 lanes x 4 B = 1 MiB per f32 tile.  Safe w.r.t. Mosaic's
# materialized intermediates on every generation; on v6e (128 MiB VMEM) this
# can be raised to 4096-8192 via the max_rows_per_chunk argument together with
# a larger vmem_limit_bytes.
_MAX_ROWS_PER_CHUNK = 2048
_VMEM_LIMIT_BYTES = 32 * 1024 * 1024


def _int_pow(v, g):
    """v ** g for a small non-negative integer g via repeated VPU multiplies."""
    if g == 0:
        return jnp.ones_like(v)
    r = v
    for _ in range(g - 1):
        r = r * v
    return r


def _focal_elementwise(x, t, *, gamma, eps, binary_target):
    """Per-element focal term (f32 in / f32 out)."""
    xc = jnp.clip(x, eps, 1.0 - eps)
    om = 1.0 - xc
    int_gamma = float(gamma).is_integer() and gamma >= 0
    if binary_target:
        # Valid only for t in {0, 1}: a single log per element instead of two.
        is_pos = t > 0.5
        sel = jnp.where(is_pos, xc, om)      # prob assigned to the true class
        other = jnp.where(is_pos, om, xc)    # prob assigned to the wrong class
        if int_gamma:
            pow_other = _int_pow(other, int(gamma))
        else:
            pow_other = jnp.exp(jnp.float32(gamma) * jnp.log(other))
        return -pow_other * jnp.log(sel)
    log_xc = jnp.log(xc)
    log_om = jnp.log(om)
    if int_gamma:
        pow_om = _int_pow(om, int(gamma))
        pow_xc = _int_pow(xc, int(gamma))
    else:
        g = jnp.float32(gamma)
        pow_om = jnp.exp(g * log_om)
        pow_xc = jnp.exp(g * log_xc)
    return -(t * pow_om * log_xc + (1.0 - t) * pow_xc * log_om)


def _dice_focal_kernel(x_ref, t_ref, isect_out, union_out, focal_out, *,
                       gamma, eps, rows, rows_chunk, chunks_per_split,
                       need_row_mask, binary_target):
    j = pl.program_id(2)                      # chunk index within this split

    @pl.when(j == 0)
    def _init():
        isect_out[...] = jnp.zeros_like(isect_out)
        union_out[...] = jnp.zeros_like(union_out)
        focal_out[...] = jnp.zeros_like(focal_out)

    def accumulate(x, t):
        # Dice partials: pure VPU work + one sublane collapse per chunk.
        isect_out[...] += jnp.sum(x * t, axis=0,
                                  keepdims=True).reshape(1, 1, 1, _LANES)
        t_sq = t if binary_target else t * t      # t*t == t for binary targets
        union_out[...] += jnp.sum(x * x + t_sq, axis=0,
                                  keepdims=True).reshape(1, 1, 1, _LANES)
        focal = _focal_elementwise(x, t, gamma=gamma, eps=eps,
                                   binary_target=binary_target)
        focal_out[...] += jnp.sum(focal, axis=0,
                                  keepdims=True).reshape(1, 1, 1, _LANES)

    x = x_ref[0].astype(jnp.float32)          # (rows_chunk, 128)
    t = t_ref[0].astype(jnp.float32)

    if need_row_mask:
        # Only chunks that overhang the valid `rows` rows pay for the mask.
        c = pl.program_id(0) * chunks_per_split + j      # logical chunk id
        chunk_end = (c + 1) * rows_chunk

        @pl.when(chunk_end <= rows)
        def _full_chunk():
            accumulate(x, t)

        @pl.when(chunk_end > rows)
        def _tail_chunk():
            row = c * rows_chunk + lax.broadcasted_iota(jnp.int32, x.shape, 0)
            valid = row < rows
            # Masked elements become x = t = 0: they add 0 to dice and exactly
            # -eps**gamma*log(1-eps) to focal (removed in the wrapper).
            accumulate(jnp.where(valid, x, 0.0), jnp.where(valid, t, 0.0))
    else:
        accumulate(x, t)


def dice_and_focal_loss(x, target, gamma=2, smooth=1.0, eps=1e-3,
                        binary_target=False,
                        max_rows_per_chunk=_MAX_ROWS_PER_CHUNK):
    """Equivalent of Dice_and_FocalLoss(gamma).forward(input, target)."""
    if not isinstance(gamma, (int, float)):
        raise ValueError("gamma must be a static Python number")
    gamma = float(gamma)

    b = x.shape[0]
    n = 1
    for d in x.shape[1:]:
        n *= d

    rows = pl.cdiv(n, _LANES)
    lane_padded_n = rows * _LANES

    def to_tiles(a):
        flat = a.reshape(b, n)                 # native dtype: no f32 upcast
        if lane_padded_n != n:                 # < 128 pad elements per sample
            flat = jnp.pad(flat, ((0, 0), (0, lane_padded_n - n)))
        return flat.reshape(b, rows, _LANES)

    xr = to_tiles(x)
    tr = to_tiles(target)

    # ---- chunking of the flattened per-sample reduction axis ---------------
    if rows <= max_rows_per_chunk:
        rows_chunk = rows                      # single chunk, no row padding
    else:
        rows_chunk = max(8, (max_rows_per_chunk // 8) * 8)
    n_chunks = pl.cdiv(rows, rows_chunk)

    # Split the reduction axis in two so one big sample can use both v7x TCs.
    n_split = 2 if n_chunks >= 2 else 1
    chunks_per_split = pl.cdiv(n_chunks, n_split)
    total_chunks = n_split * chunks_per_split
    covered_rows = total_chunks * rows_chunk
    need_row_mask = covered_rows > rows

    def in_index(s, i, j):
        c = s * chunks_per_split + j
        if total_chunks > n_chunks:            # clamp the fully-masked dummy chunk
            c = jnp.minimum(c, n_chunks - 1)
        return (i, c, 0)

    kernel = functools.partial(
        _dice_focal_kernel, gamma=gamma, eps=float(eps), rows=rows,
        rows_chunk=rows_chunk, chunks_per_split=chunks_per_split,
        need_row_mask=need_row_mask, binary_target=binary_target)

    part_shape = jax.ShapeDtypeStruct((n_split, b, 1, _LANES), jnp.float32)
    part_spec = pl.BlockSpec((1, 1, 1, _LANES), lambda s, i, j: (s, i, 0, 0))
    in_spec = pl.BlockSpec((1, rows_chunk, _LANES), in_index)

    isect_p, union_p, focal_p = pl.pallas_call(
        kernel,
        out_shape=(part_shape, part_shape, part_shape),
        grid_spec=pltpu.PrefetchScalarGridSpec(
            num_scalar_prefetch=0,
            grid=(n_split, b, chunks_per_split),
            in_specs=[in_spec, in_spec],
            out_specs=(part_spec, part_spec, part_spec),
        ),
        compiler_params=pltpu.CompilerParams(
            dimension_semantics=("parallel", "parallel", "arbitrary"),
            vmem_limit_bytes=_VMEM_LIMIT_BYTES),
    )(xr, tr)

    # ---- tiny final reductions in the wrapper -------------------------------
    isect = jnp.sum(isect_p, axis=(0, 2, 3))       # (b,)
    union = jnp.sum(union_p, axis=(0, 2, 3))       # (b,)
    focal_sum = jnp.sum(focal_p)                   # scalar

    # Closed-form removal of the focal contribution of padded / masked
    # elements (all processed as x = t = 0): each adds -eps**gamma*log(1-eps).
    pad_elems = b * (covered_rows * _LANES - n)
    if pad_elems:
        eps32 = jnp.float32(eps)
        if gamma.is_integer() and gamma >= 0:
            pow_eps = _int_pow(eps32, int(gamma))
        else:
            pow_eps = jnp.exp(jnp.float32(gamma) * jnp.log(eps32))
        pad_const = -pow_eps * jnp.log(jnp.float32(1.0) - eps32)
        focal_sum = focal_sum - jnp.float32(pad_elems) * pad_const

    dice = jnp.mean(1.0 - (2.0 * isect + smooth) / (union + smooth))
    return dice + focal_sum / float(b * n)
    # TODO(synk): block several small samples per grid step to amortize the
    # ~0.35us/step overhead in the tiny-sample regime.


def _reference_loss(x, target, gamma=2, smooth=1.0, eps=1e-3):
    """Pure-JAX reference mirroring the PyTorch module (for verification)."""
    axes = tuple(range(1, x.ndim))
    x = x.astype(jnp.float32)
    target = target.astype(jnp.float32)
    intersect = jnp.sum(x * target, axis=axes)
    union = jnp.sum(x * x, axis=axes) + jnp.sum(target * target, axis=axes)
    dice = jnp.mean(1.0 - (2.0 * intersect + smooth) / (union + smooth))
    xc = jnp.clip(x, eps, 1.0 - eps)
    focal = -(target * (1.0 - xc) ** gamma * jnp.log(xc)
              + (1.0 - target) * xc ** gamma * jnp.log(1.0 - xc))
    return dice + jnp.mean(focal)


if __name__ == "__main__":
    key = jax.random.PRNGKey(0)
    kx, kt = jax.random.split(key)

    B, C, H, W = 2, 4, 16, 16           # NCHW, as the PyTorch module expects
    # "input" behaves like predicted probabilities, "target" like a binary mask.
    x = jax.nn.sigmoid(jax.random.normal(kx, (B, C, H, W), dtype=jnp.float32))
    target = (jax.random.uniform(kt, (B, C, H, W)) > 0.5).astype(jnp.float32)

    # 1) Main path (n divisible by 128, single chunk per sample).
    loss = jax.block_until_ready(dice_and_focal_loss(x, target, gamma=2))
    ref = _reference_loss(x, target, gamma=2)
    assert jnp.allclose(loss, ref, rtol=1e-5, atol=1e-5), (loss, ref)

    # 2) Lane-tail padding path (n % 128 != 0) -> closed-form focal correction.
    x2, t2 = x[:, :3, :11, :13], target[:, :3, :11, :13]
    loss2 = jax.block_until_ready(dice_and_focal_loss(x2, t2, gamma=2))
    ref2 = _reference_loss(x2, t2, gamma=2)
    assert jnp.allclose(loss2, ref2, rtol=1e-5, atol=1e-5), (loss2, ref2)

    # 3) Forced chunking: reduction-axis split + partial tail-chunk row mask
    #    (same code path huge segmentation volumes take, at a tiny size).
    x3 = jax.nn.sigmoid(jax.random.normal(kx, (1, 2, 19, 64), dtype=jnp.float32))
    t3 = (jax.random.uniform(kt, (1, 2, 19, 64)) > 0.5).astype(jnp.float32)
    loss3 = jax.block_until_ready(
        dice_and_focal_loss(x3, t3, gamma=2, max_rows_per_chunk=8))
    ref3 = _reference_loss(x3, t3, gamma=2)
    assert jnp.allclose(loss3, ref3, rtol=1e-5, atol=1e-5), (loss3, ref3)

    # 4) Optional binary-target fast path (valid here: target is exactly {0,1}).
    loss4 = jax.block_until_ready(
        dice_and_focal_loss(x, target, gamma=2, binary_target=True))
    assert jnp.allclose(loss4, ref, rtol=1e-5, atol=1e-5), (loss4, ref)

    print("KERNEL_OK")
</pallas_src>

<mosaic_0001>
module attributes {stable_mosaic.version = 11 : i64} {
  func.func @_dice_focal_kernel(%arg0: i32, %arg1: i32, %arg2: i32, %arg3: memref<1x8x128xf32, #tpu.memory_space<vmem>>, %arg4: memref<1x8x128xf32, #tpu.memory_space<vmem>>, %arg5: memref<1x1x1x128xf32, #tpu.memory_space<vmem>>, %arg6: memref<1x1x1x128xf32, #tpu.memory_space<vmem>>, %arg7: memref<1x1x1x128xf32, #tpu.memory_space<vmem>>) attributes {dimension_semantics = [#tpu.dimension_semantics<parallel>, #tpu.dimension_semantics<parallel>, #tpu.dimension_semantics<arbitrary>], iteration_bounds = array<i64: 1, 2, 1>, scalar_prefetch = 0 : i64, scratch_operands = 0 : i64, tpu.core_type = #tpu.core_type<tc>, window_params = [{transform_indices = @transform_0, window_bounds = array<i64: 1, 8, 128>}, {transform_indices = @transform_1, window_bounds = array<i64: 1, 8, 128>}, {transform_indices = @transform_2, window_bounds = array<i64: 1, 1, 1, 128>}, {transform_indices = @transform_3, window_bounds = array<i64: 1, 1, 1, 128>}, {transform_indices = @transform_4, window_bounds = array<i64: 1, 1, 1, 128>}]} {
    %c0_i32 = arith.constant 0 : i32
    %0 = arith.cmpi eq, %arg2, %c0_i32 : i32
    %1 = arith.extui %0 : i1 to i32
    %c0_i32_0 = arith.constant 0 : i32
    %2 = arith.cmpi ne, %1, %c0_i32_0 : i32
    scf.if %2 {
      %cst_37 = arith.constant 0.000000e+00 : f32
      %48 = vector.broadcast %cst_37 : f32 to vector<1x1x1x128xf32>
      %c0_38 = arith.constant 0 : index
      %c0_39 = arith.constant 0 : index
      %c0_40 = arith.constant 0 : index
      %c0_41 = arith.constant 0 : index
      %49 = vector.load %arg5[%c0_38, %c0_39, %c0_40, %c0_41] : memref<1x1x1x128xf32, #tpu.memory_space<vmem>>, vector<1x1x1x128xf32>
      tpu.vector_store %arg5[%c0_38, %c0_39, %c0_40, %c0_41], %48 {strides = array<i32>} : memref<1x1x1x128xf32, #tpu.memory_space<vmem>>, vector<1x1x1x128xf32>,
      %cst_42 = arith.constant 0.000000e+00 : f32
      %50 = vector.broadcast %cst_42 : f32 to vector<1x1x1x128xf32>
      %c0_43 = arith.constant 0 : index
      %c0_44 = arith.constant 0 : index
      %c0_45 = arith.constant 0 : index
      %c0_46 = arith.constant 0 : index
      %51 = vector.load %arg6[%c0_43, %c0_44, %c0_45, %c0_46] : memref<1x1x1x128xf32, #tpu.memory_space<vmem>>, vector<1x1x1x128xf32>
      tpu.vector_store %arg6[%c0_43, %c0_44, %c0_45, %c0_46], %50 {strides = array<i32>} : memref<1x1x1x128xf32, #tpu.memory_space<vmem>>, vector<1x1x1x128xf32>,
      %cst_47 = arith.constant 0.000000e+00 : f32
      %52 = vector.broadcast %cst_47 : f32 to vector<1x1x1x128xf32>
      %c0_48 = arith.constant 0 : index
      %c0_49 = arith.constant 0 : index
      %c0_50 = arith.constant 0 : index
      %c0_51 = arith.constant 0 : index
      %53 = vector.load %arg7[%c0_48, %c0_49, %c0_50, %c0_51] : memref<1x1x1x128xf32, #tpu.memory_space<vmem>>, vector<1x1x1x128xf32>
      tpu.vector_store %arg7[%c0_48, %c0_49, %c0_50, %c0_51], %52 {strides = array<i32>} : memref<1x1x1x128xf32, #tpu.memory_space<vmem>>, vector<1x1x1x128xf32>,
    } else {
    }
    %c0 = arith.constant 0 : index
    %c0_1 = arith.constant 0 : index
    %c0_2 = arith.constant 0 : index
    %3 = vector.load %arg3[%c0, %c0_1, %c0_2] : memref<1x8x128xf32, #tpu.memory_space<vmem>>, vector<1x8x128xf32>
    %4 = vector.shape_cast %3 : vector<1x8x128xf32> to vector<8x128xf32>
    %c0_3 = arith.constant 0 : index
    %c0_4 = arith.constant 0 : index
    %c0_5 = arith.constant 0 : index
    %5 = vector.load %arg4[%c0_3, %c0_4, %c0_5] : memref<1x8x128xf32, #tpu.memory_space<vmem>>, vector<1x8x128xf32>
    %6 = vector.shape_cast %5 : vector<1x8x128xf32> to vector<8x128xf32>
    %c0_6 = arith.constant 0 : index
    %c0_7 = arith.constant 0 : index
    %c0_8 = arith.constant 0 : index
    %c0_9 = arith.constant 0 : index
    %7 = vector.load %arg5[%c0_6, %c0_7, %c0_8, %c0_9] : memref<1x1x1x128xf32, #tpu.memory_space<vmem>>, vector<1x1x1x128xf32>
    %8 = arith.mulf %4, %6 : vector<8x128xf32>
    %cst = arith.constant dense<0.000000e+00> : vector<128xf32>
    %9 = vector.multi_reduction <add>, %8, %cst [0] : vector<8x128xf32> to vector<128xf32>
    %10 = vector.shape_cast %9 : vector<128xf32> to vector<1x128xf32>
    %11 = vector.shape_cast %10 : vector<1x128xf32> to vector<1x1x1x128xf32>
    %12 = arith.addf %7, %11 : vector<1x1x1x128xf32>
    %c0_10 = arith.constant 0 : index
    %c0_11 = arith.constant 0 : index
    %c0_12 = arith.constant 0 : index
    %c0_13 = arith.constant 0 : index
    %13 = vector.load %arg5[%c0_10, %c0_11, %c0_12, %c0_13] : memref<1x1x1x128xf32, #tpu.memory_space<vmem>>, vector<1x1x1x128xf32>
    tpu.vector_store %arg5[%c0_10, %c0_11, %c0_12, %c0_13], %12 {strides = array<i32>} : memref<1x1x1x128xf32, #tpu.memory_space<vmem>>, vector<1x1x1x128xf32>,
    %14 = arith.mulf %6, %6 : vector<8x128xf32>
    %c0_14 = arith.constant 0 : index
    %c0_15 = arith.constant 0 : index
    %c0_16 = arith.constant 0 : index
    %c0_17 = arith.constant 0 : index
    %15 = vector.load %arg6[%c0_14, %c0_15, %c0_16, %c0_17] : memref<1x1x1x128xf32, #tpu.memory_space<vmem>>, vector<1x1x1x128xf32>
    %16 = arith.mulf %4, %4 : vector<8x128xf32>
    %17 = arith.addf %16, %14 : vector<8x128xf32>
    %cst_18 = arith.constant dense<0.000000e+00> : vector<128xf32>
    %18 = vector.multi_reduction <add>, %17, %cst_18 [0] : vector<8x128xf32> to vector<128xf32>
    %19 = vector.shape_cast %18 : vector<128xf32> to vector<1x128xf32>
    %20 = vector.shape_cast %19 : vector<1x128xf32> to vector<1x1x1x128xf32>
    %21 = arith.addf %15, %20 : vector<1x1x1x128xf32>
    %c0_19 = arith.constant 0 : index
    %c0_20 = arith.constant 0 : index
    %c0_21 = arith.constant 0 : index
    %c0_22 = arith.constant 0 : index
    %22 = vector.load %arg6[%c0_19, %c0_20, %c0_21, %c0_22] : memref<1x1x1x128xf32, #tpu.memory_space<vmem>>, vector<1x1x1x128xf32>
    tpu.vector_store %arg6[%c0_19, %c0_20, %c0_21, %c0_22], %21 {strides = array<i32>} : memref<1x1x1x128xf32, #tpu.memory_space<vmem>>, vector<1x1x1x128xf32>,
    %cst_23 = arith.constant 1.000000e-03 : f32
    %cst_24 = arith.constant 9.990000e-01 : f32
    %23 = vector.broadcast %cst_23 : f32 to vector<8x128xf32>
    %24 = arith.maximumf %23, %4 : vector<8x128xf32>
    %25 = vector.broadcast %cst_24 : f32 to vector<8x128xf32>
    %26 = arith.minimumf %25, %24 : vector<8x128xf32>
    %cst_25 = arith.constant 1.000000e+00 : f32
    %27 = vector.broadcast %cst_25 : f32 to vector<8x128xf32>
    %28 = arith.subf %27, %26 : vector<8x128xf32>
    %29 = math.log %26 : vector<8x128xf32>
    %30 = math.log %28 : vector<8x128xf32>
    %31 = arith.mulf %28, %28 : vector<8x128xf32>
    %32 = arith.mulf %26, %26 : vector<8x128xf32>
    %33 = arith.mulf %6, %31 : vector<8x128xf32>
    %34 = arith.mulf %33, %29 : vector<8x128xf32>
    %cst_26 = arith.constant 1.000000e+00 : f32
    %35 = vector.broadcast %cst_26 : f32 to vector<8x128xf32>
    %36 = arith.subf %35, %6 : vector<8x128xf32>
    %37 = arith.mulf %36, %32 : vector<8x128xf32>
    %38 = arith.mulf %37, %30 : vector<8x128xf32>
    %39 = arith.addf %34, %38 : vector<8x128xf32>
    %cst_27 = arith.constant 0.000000e+00 : f32
    %40 = vector.broadcast %cst_27 : f32 to vector<8x128xf32>
    %41 = arith.subf %40, %39 : vector<8x128xf32>
    %c0_28 = arith.constant 0 : index
    %c0_29 = arith.constant 0 : index
    %c0_30 = arith.constant 0 : index
    %c0_31 = arith.constant 0 : index
    %42 = vector.load %arg7[%c0_28, %c0_29, %c0_30, %c0_31] : memref<1x1x1x128xf32, #tpu.memory_space<vmem>>, vector<1x1x1x128xf32>
    %cst_32 = arith.constant dense<0.000000e+00> : vector<128xf32>
    %43 = vector.multi_reduction <add>, %41, %cst_32 [0] : vector<8x128xf32> to vector<128xf32>
    %44 = vector.shape_cast %43 : vector<128xf32> to vector<1x128xf32>
    %45 = vector.shape_cast %44 : vector<1x128xf32> to vector<1x1x1x128xf32>
    %46 = arith.addf %42, %45 : vector<1x1x1x128xf32>
    %c0_33 = arith.constant 0 : index
    %c0_34 = arith.constant 0 : index
    %c0_35 = arith.constant 0 : index
    %c0_36 = arith.constant 0 : index
    %47 = vector.load %arg7[%c0_33, %c0_34, %c0_35, %c0_36] : memref<1x1x1x128xf32, #tpu.memory_space<vmem>>, vector<1x1x1x128xf32>
    tpu.vector_store %arg7[%c0_33, %c0_34, %c0_35, %c0_36], %46 {strides = array<i32>} : memref<1x1x1x128xf32, #tpu.memory_space<vmem>>, vector<1x1x1x128xf32>,
    return
  }
  func.func @transform_0(%arg0: i32, %arg1: i32, %arg2: i32) -> (i32, i32, i32) {
    %c1_i32 = arith.constant 1 : i32
    %0 = arith.muli %arg0, %c1_i32 : i32
    %1 = arith.addi %0, %arg2 : i32
    %c0_i32 = arith.constant 0 : i32
    %c0_i32_0 = arith.constant 0 : i32
    return %arg1, %1, %c0_i32 : i32, i32, i32
  }
  func.func @transform_1(%arg0: i32, %arg1: i32, %arg2: i32) -> (i32, i32, i32) {
    %c1_i32 = arith.constant 1 : i32
    %0 = arith.muli %arg0, %c1_i32 : i32
    %1 = arith.addi %0, %arg2 : i32
    %c0_i32 = arith.constant 0 : i32
    %c0_i32_0 = arith.constant 0 : i32
    return %arg1, %1, %c0_i32 : i32, i32, i32
  }
  func.func @transform_2(%arg0: i32, %arg1: i32, %arg2: i32) -> (i32, i32, i32, i32) {
    %c0_i32 = arith.constant 0 : i32
    %c0_i32_0 = arith.constant 0 : i32
    %c0_i32_1 = arith.constant 0 : i32
    return %arg0, %arg1, %c0_i32, %c0_i32_0 : i32, i32, i32, i32
  }
  func.func @transform_3(%arg0: i32, %arg1: i32, %arg2: i32) -> (i32, i32, i32, i32) {
    %c0_i32 = arith.constant 0 : i32
    %c0_i32_0 = arith.constant 0 : i32
    %c0_i32_1 = arith.constant 0 : i32
    return %arg0, %arg1, %c0_i32, %c0_i32_0 : i32, i32, i32, i32
  }
  func.func @transform_4(%arg0: i32, %arg1: i32, %arg2: i32) -> (i32, i32, i32, i32) {
    %c0_i32 = arith.constant 0 : i32
    %c0_i32_0 = arith.constant 0 : i32
    %c0_i32_1 = arith.constant 0 : i32
    return %arg0, %arg1, %c0_i32, %c0_i32_0 : i32, i32, i32, i32
  }
}

</mosaic_0001>

<llo_original>
// kernel: tpu_custom_call.1
$region0: #{tpu_custom_call.1}
  #allocation0 [shape = 'u32[]', space=smem, size = 0x4, offset = 0x4, fixed_abs, tag = 'smem constant byte address 0x4 - core index']
  #allocation1 [shape = 'u32[144,128]{1,0:T(1,128)}', space=vmem, size = 0x12000, scoped, tag = 'internal scratch']
  %s0 = inlined_call_operand.hbm [shape: f32[2,8,128], index: 0, kind: input, shape index: {}]
  %s1 = inlined_call_operand.hbm [shape: f32[2,8,128], index: 1, kind: input, shape index: {}]
  %s2 = inlined_call_operand.hbm [shape: f32[1,2,1,128], index: 2, kind: output, shape index: {0}]
  %s3 = inlined_call_operand.hbm [shape: f32[1,2,1,128], index: 3, kind: output, shape index: {1}]
  %s4 = inlined_call_operand.hbm [shape: f32[1,2,1,128], index: 4, kind: output, shape index: {2}]
  %5 = xla_tuple %s2, %s3, %s4
  %s6 = sld [smem:[#allocation0]]
  $region69: #{tpu_custom_call.1} parent=0
    _
  %s8 = ssub.s32 1, %s6
  %s9 = scalar_select 0, %s8, %s6
  $region1: #{tpu_custom_call.1} parent=0
    #allocation2 [shape = 'u8[8192]{0}', space=vmem, size = 0x2000, scoped, tag = 'input window, operand 0']
    #allocation3 [shape = 's32[2]{0}', space=sflag, size = 0x8, scoped, tag = 'scoped memory for tpu_custom_call.1']
    #allocation4 [shape = 's32[2]{0}', space=sflag, size = 0x8, scoped, tag = 'scoped memory for tpu_custom_call.1']
    #allocation5 [shape = 'u8[8192]{0}', space=vmem, size = 0x2000, scoped, tag = 'input window, operand 1']
    #allocation6 [shape = 's32[2]{0}', space=sflag, size = 0x8, scoped, tag = 'scoped memory for tpu_custom_call.1']
    #allocation7 [shape = 'u8[1024]{0}', space=vmem, size = 0x400, scoped, tag = 'output window, operand 0']
    #allocation8 [shape = 'u8[1024]{0}', space=vmem, size = 0x400, scoped, tag = 'output window, operand 1']
    #allocation9 [shape = 's32[2]{0}', space=sflag, size = 0x8, scoped, tag = 'scoped memory for tpu_custom_call.1']
    #allocation10 [shape = 'u8[1024]{0}', space=vmem, size = 0x400, scoped, tag = 'output window, operand 2']
    %10 = vsyncpa [#allocation3], 0
    %s11 = scalar_lea.sflag [#allocation3], 1
    %12 = vsyncpa %s11, 0
    %13 = vsyncpa [#allocation6], 0
    %s14 = scalar_lea.sflag [#allocation6], 1
    %15 = vsyncpa %s14, 0
    %16 = vsyncpa [#allocation4], 0
    %s17 = scalar_lea.sflag [#allocation4], 1
    %18 = vsyncpa %s17, 0
    %19 = vsyncpa [#allocation9], 0
    %s20 = scalar_lea.sflag [#allocation9], 1
    %21 = vsyncpa %s20, 0
    loop: start=0, step=1, limit=4
    $region2: #{tpu_custom_call.1} parent=1 // loop_pre_header
      _
    $region3: #{tpu_custom_call.1} parent=1 // loop_header
      %s23 = sphi 0, %s27
      %p24 = scmp.ge.s32.totalorder %s23, 4
      %s30 = sphi 0, %s49
      %s31 = sphi 0, %s45
      %s32 = sphi 0, %s41
      %s33 = sphi 0, %s30
      %s34 = sphi 0, %s31
      %s35 = sphi 0, %s32
      %s36 = sphi 0, %s33
      %s37 = sphi 0, %s34
      %s38 = sphi 0, %s35
      %s56 = sphi 0, %s58
      %s59 = sphi 0, %s56
      %s60 = sphi 0, %s59
      %s76 = sphi 0, %s60
      %s86 = sphi 0, %s88
      %s89 = sphi 0, %s86
      %s90 = sphi 0, %s89
      %s106 = sphi 0, %s90
      %s114 = sphi 0, %s116
      %s117 = sphi 0, %s114
      %s118 = sphi 0, %s117
      %s134 = sphi 0, %s118
      %s142 = sphi 0, %s144
      %s145 = sphi 0, %s142
      %s146 = sphi 0, %s145
      %s162 = sphi 0, %s146
      %s170 = sphi 0, %s172
      %s173 = sphi 0, %s170
      %s174 = sphi 0, %s173
      %s190 = sphi 0, %s174
    $region4: #{tpu_custom_call.1} parent=1 // loop_header_branch
      %26 = sbr.rel (%p24) target = $region8
    $region5: #{tpu_custom_call.1} parent=1 // loop_body
      %s28 = ssub.s32 %s23, 1
      %s29 = ssub.s32 %s23, 2
      %s39 = sadd.s32 1, %s32
      %p40 = scmp.ge.s32.totalorder %s39, 1
      %s41 = scalar_select %p40, 0, %s39
      %s42 = sadd.s32 1, %s31
      %s43 = scalar_select %p40, %s42, %s31
      %p44 = scmp.ge.s32.totalorder %s43, 2
      %s45 = scalar_select %p44, 0, %s43
      %s46 = sadd.s32 1, %s30
      %s47 = scalar_select %p44, %s46, %s30
      %p48 = scmp.ge.s32.totalorder %s47, 1
      %s49 = scalar_select %p48, 0, %s47
      %s50 = sadd.s32 %s30, %s32
      %s51 = sadd.s32 %s49, %s41
      %s52 = ssub.s32 %s31, %s45
      %s53 = ssub.s32 %s50, %s51
      %s54 = sor.u32 %s52, %s53
      %p55 = scmp.eq.s32.totalorder %s54, 0
      %s57 = sadd.s32 %s56, 1
      %s58 = scalar_select %p55, %s56, %s57
      %p61 = pneg %p55
      %p62 = scmp.eq.s32.totalorder %s23, 1
      %p63 = por %p61, %p62
      %p64 = scmp.ne.s32.totalorder %s56, %s59
      %p65 = scmp.eq.s32.totalorder %s23, 0
      %p66 = por %p64, %p65
      %p67 = scmp.ne.s32.totalorder %s56, %s59
      %p68 = scmp.eq.s32.totalorder %s28, 1
      %p69 = por %p67, %p68
      %p70 = scmp.ne.s32.totalorder %s59, %s60
      %p71 = scmp.eq.s32.totalorder %s28, 0
      %p72 = por %p70, %p71
      %p73 = scmp.ne.s32.totalorder %s59, %s60
      %p74 = scmp.eq.s32.totalorder %s29, 1
      %p75 = por %p73, %p74
      %p77 = scmp.ne.s32.totalorder %s60, %s76
      %p78 = scmp.eq.s32.totalorder %s29, 0
      %p79 = por %p77, %p78
      %s80 = sadd.s32 %s30, %s32
      %s81 = sadd.s32 %s49, %s41
      %s82 = ssub.s32 %s31, %s45
      %s83 = ssub.s32 %s80, %s81
      %s84 = sor.u32 %s82, %s83
      %p85 = scmp.eq.s32.totalorder %s84, 0
      %s87 = sadd.s32 %s86, 1
      %s88 = scalar_select %p85, %s86, %s87
      %p91 = pneg %p85
      %p92 = scmp.eq.s32.totalorder %s23, 1
      %p93 = por %p91, %p92
      %p94 = scmp.ne.s32.totalorder %s86, %s89
      %p95 = scmp.eq.s32.totalorder %s23, 0
      %p96 = por %p94, %p95
      %p97 = scmp.ne.s32.totalorder %s86, %s89
      %p98 = scmp.eq.s32.totalorder %s28, 1
      %p99 = por %p97, %p98
      %p100 = scmp.ne.s32.totalorder %s89, %s90
      %p101 = scmp.eq.s32.totalorder %s28, 0
      %p102 = por %p100, %p101
      %p103 = scmp.ne.s32.totalorder %s89, %s90
      %p104 = scmp.eq.s32.totalorder %s29, 1
      %p105 = por %p103, %p104
      %p107 = scmp.ne.s32.totalorder %s90, %s106
      %p108 = scmp.eq.s32.totalorder %s29, 0
      %p109 = por %p107, %p108
      %s110 = ssub.s32 %s30, %s49
      %s111 = ssub.s32 %s31, %s45
      %s112 = sor.u32 %s110, %s111
      %p113 = scmp.eq.s32.totalorder %s112, 0
      %s115 = sadd.s32 %s114, 1
      %s116 = scalar_select %p113, %s114, %s115
      %p119 = pneg %p113
      %p120 = scmp.eq.s32.totalorder %s23, 1
      %p121 = por %p119, %p120
      %p122 = scmp.ne.s32.totalorder %s114, %s117
      %p123 = scmp.eq.s32.totalorder %s23, 0
      %p124 = por %p122, %p123
      %p125 = scmp.ne.s32.totalorder %s114, %s117
      %p126 = scmp.eq.s32.totalorder %s28, 1
      %p127 = por %p125, %p126
      %p128 = scmp.ne.s32.totalorder %s117, %s118
      %p129 = scmp.eq.s32.totalorder %s28, 0
      %p130 = por %p128, %p129
      %p131 = scmp.ne.s32.totalorder %s117, %s118
      %p132 = scmp.eq.s32.totalorder %s29, 1
      %p133 = por %p131, %p132
      %p135 = scmp.ne.s32.totalorder %s118, %s134
      %p136 = scmp.eq.s32.totalorder %s29, 0
      %p137 = por %p135, %p136
      %s138 = ssub.s32 %s30, %s49
      %s139 = ssub.s32 %s31, %s45
      %s140 = sor.u32 %s138, %s139
      %p141 = scmp.eq.s32.totalorder %s140, 0
      %s143 = sadd.s32 %s142, 1
      %s144 = scalar_select %p141, %s142, %s143
      %p147 = pneg %p141
      %p148 = scmp.eq.s32.totalorder %s23, 1
      %p149 = por %p147, %p148
      %p150 = scmp.ne.s32.totalorder %s142, %s145
      %p151 = scmp.eq.s32.totalorder %s23, 0
      %p152 = por %p150, %p151
      %p153 = scmp.ne.s32.totalorder %s142, %s145
      %p154 = scmp.eq.s32.totalorder %s28, 1
      %p155 = por %p153, %p154
      %p156 = scmp.ne.s32.totalorder %s145, %s146
      %p157 = scmp.eq.s32.totalorder %s28, 0
      %p158 = por %p156, %p157
      %p159 = scmp.ne.s32.totalorder %s145, %s146
      %p160 = scmp.eq.s32.totalorder %s29, 1
      %p161 = por %p159, %p160
      %p163 = scmp.ne.s32.totalorder %s146, %s162
      %p164 = scmp.eq.s32.totalorder %s29, 0
      %p165 = por %p163, %p164
      %s166 = ssub.s32 %s30, %s49
      %s167 = ssub.s32 %s31, %s45
      %s168 = sor.u32 %s166, %s167
      %p169 = scmp.eq.s32.totalorder %s168, 0
      %s171 = sadd.s32 %s170, 1
      %s172 = scalar_select %p169, %s170, %s171
      %p175 = pneg %p169
      %p176 = scmp.eq.s32.totalorder %s23, 1
      %p177 = por %p175, %p176
      %p178 = scmp.ne.s32.totalorder %s170, %s173
      %p179 = scmp.eq.s32.totalorder %s23, 0
      %p180 = por %p178, %p179
      %p181 = scmp.ne.s32.totalorder %s170, %s173
      %p182 = scmp.eq.s32.totalorder %s28, 1
      %p183 = por %p181, %p182
      %p184 = scmp.ne.s32.totalorder %s173, %s174
      %p185 = scmp.eq.s32.totalorder %s28, 0
      %p186 = por %p184, %p185
      %p187 = scmp.ne.s32.totalorder %s173, %s174
      %p188 = scmp.eq.s32.totalorder %s29, 1
      %p189 = por %p187, %p188
      %p191 = scmp.ne.s32.totalorder %s174, %s190
      %p192 = scmp.eq.s32.totalorder %s29, 0
      %p193 = por %p191, %p192
      %p194 = scmp.le.s32.totalorder 1, %s23
      %p195 = scmp.lt.s32.totalorder %s23, 3
      %p196 = pnand %p194, %p195
      %p197 = pneg %p196
      // Predicated region
      $region9: #{tpu_custom_call.1} parent=5 // pred_check
        _
      $region10: #{tpu_custom_call.1} parent=5 // pred_check_branch
        %199 = sbr.rel (%p196) target = $region12
      $region11: #{tpu_custom_call.1} parent=5 // pred_region
        %s200 = ssub.s32 %s23, 1
      $region12: #{tpu_custom_call.1} parent=5 // pred_fallthru
        _
      %p201 = scmp.lt.s32.totalorder %s23, 2
      // Predicated region
      $region13: #{tpu_custom_call.1} parent=5 // pred_check
        %p202 = pneg %p201
      $region14: #{tpu_custom_call.1} parent=5 // pred_check_branch
        %204 = sbr.rel (%p202) target = $region16
      $region15: #{tpu_custom_call.1} parent=5 // pred_region
        // Predicated region
        $region17: #{tpu_custom_call.1} parent=15 // pred_check
          %p205 = pneg %p66
        $region18: #{tpu_custom_call.1} parent=15 // pred_check_branch
          %207 = sbr.rel (%p205) target = $region20
        $region19: #{tpu_custom_call.1} parent=15 // pred_region
          %s208 = sand.u32 %s56, 1
          %s209 = scalar_lea.sflag [#allocation3], %s208
          %s210 = sand.u32 %s56, 1
          %s211 = smul.addr %s210, 8
          %s212 = scalar_lea.vmem [#allocation2], %s211
          %s213 = sadd.s32 %s30, %s32
          %s215 = ssub.s32 128, 128
          %216 = vsyncadd %s209, %s215
          %s217 = sadd.s32 %s213, %s31
          %s218 = smul.addr %s217, 128
          %s219 = scalar_lea.hbm %s0, %s218
          %s221 = sshll.u32 %s212, 4
          %s222 = int_to_ptr.vmem [resolvable:$true] %s221
          %224 = dma.hbm_to_vmem [thread:$0]  %s219, 128, %s222, %s209
        $region20: #{tpu_custom_call.1} parent=15 // pred_fallthru
          _
        // Predicated region
        $region21: #{tpu_custom_call.1} parent=15 // pred_check
          %p225 = pneg %p96
        $region22: #{tpu_custom_call.1} parent=15 // pred_check_branch
          %227 = sbr.rel (%p225) target = $region24
        $region23: #{tpu_custom_call.1} parent=15 // pred_region
          %s228 = sand.u32 %s86, 1
          %s229 = scalar_lea.sflag [#allocation6], %s228
          %s230 = sand.u32 %s86, 1
          %s231 = smul.addr %s230, 8
          %s232 = scalar_lea.vmem [#allocation5], %s231
          %s233 = sadd.s32 %s30, %s32
          %s235 = ssub.s32 128, 128
          %236 = vsyncadd %s229, %s235
          %s237 = sadd.s32 %s233, %s31
          %s238 = smul.addr %s237, 128
          %s239 = scalar_lea.hbm %s1, %s238
          %s241 = sshll.u32 %s232, 4
          %s242 = int_to_ptr.vmem [resolvable:$true] %s241
          %244 = dma.hbm_to_vmem [thread:$0]  %s239, 128, %s242, %s229
        $region24: #{tpu_custom_call.1} parent=15 // pred_fallthru
          _
      $region16: #{tpu_custom_call.1} parent=5 // pred_fallthru
        _
      %p245 = scmp.le.s32.totalorder 1, %s23
      %p246 = scmp.lt.s32.totalorder %s23, 3
      %p247 = pnand %p245, %p246
      %p248 = pneg %p247
      // Predicated region
      $region25: #{tpu_custom_call.1} parent=5 // pred_check
        _
      $region26: #{tpu_custom_call.1} parent=5 // pred_check_branch
        %250 = sbr.rel (%p247) target = $region28
      $region27: #{tpu_custom_call.1} parent=5 // pred_region
        %s251 = ssub.s32 %s23, 1
        %s252 = sand.u32 %s59, 1
        %s253 = scalar_lea.sflag [#allocation3], %s252
        %s254 = sand.u32 %s59, 1
        %s255 = smul.addr %s254, 8
        %s256 = scalar_lea.vmem [#allocation2], %s255
        // Predicated region
        $region29: #{tpu_custom_call.1} parent=27 // pred_check
          %p257 = pneg %p72
        $region30: #{tpu_custom_call.1} parent=27 // pred_check_branch
          %259 = sbr.rel (%p257) target = $region32
        $region31: #{tpu_custom_call.1} parent=27 // pred_region
          %260 = dma.done %s253, 128
        $region32: #{tpu_custom_call.1} parent=27 // pred_fallthru
          _
        %s261 = sand.u32 %s89, 1
        %s262 = scalar_lea.sflag [#allocation6], %s261
        %s263 = sand.u32 %s89, 1
        %s264 = smul.addr %s263, 8
        %s265 = scalar_lea.vmem [#allocation5], %s264
        // Predicated region
        $region33: #{tpu_custom_call.1} parent=27 // pred_check
          %p266 = pneg %p102
        $region34: #{tpu_custom_call.1} parent=27 // pred_check_branch
          %268 = sbr.rel (%p266) target = $region36
        $region35: #{tpu_custom_call.1} parent=27 // pred_region
          %269 = dma.done %s262, 128
        $region36: #{tpu_custom_call.1} parent=27 // pred_fallthru
          _
        %s270 = sand.u32 %s59, 1
        %s271 = scalar_lea.sflag [#allocation3], %s270
        %s272 = sand.u32 %s59, 1
        %s273 = smul.addr %s272, 8
        %s274 = scalar_lea.vmem [#allocation2], %s273
        %p275 = pneg %p72
        %p276 = pneg %p69
        %s277 = sand.u32 %s89, 1
        %s278 = scalar_lea.sflag [#allocation6], %s277
        %s279 = sand.u32 %s89, 1
        %s280 = smul.addr %s279, 8
        %s281 = scalar_lea.vmem [#allocation5], %s280
        %p282 = pneg %p102
        %p283 = pneg %p99
        %p284 = pneg %p130
        %p285 = pneg %p127
        %s286 = sand.u32 %s117, 1
        %s287 = scalar_lea.sflag [#allocation4], %s286
        %s288 = sand.u32 %s117, 1
        %s289 = scalar_lea.vmem [#allocation7], %s288
        %p290 = pneg %p158
        %p291 = pneg %p155
        %s292 = sand.u32 %s28, 1
        %s293 = scalar_lea.sflag [#allocation9], %s292
        %s294 = sand.u32 %s145, 1
        %s295 = scalar_lea.vmem [#allocation8], %s294
        %p296 = pneg %p186
        %p297 = pneg %p183
        %s298 = sand.u32 %s28, 1
        %s299 = scalar_lea.sflag [#allocation9], %s298
        %s300 = sand.u32 %s173, 1
        %s301 = scalar_lea.vmem [#allocation10], %s300
        %s302 = sadd.s32 %s33, %s35
        %s303 = sadd.s32 %s33, %s35
        %p304 = scmp.eq.s32.totalorder %s35, 0
        // Predicated region
        $region37: #{tpu_custom_call.1} parent=27 // pred_check
          %p305 = pneg %p304
        $region38: #{tpu_custom_call.1} parent=27 // pred_check_branch
          %307 = sbr.rel (%p305) target = $region40
        $region39: #{tpu_custom_call.1} parent=27 // pred_region
          %308 = vst [vmem:[%s289] sm:$0x1] 0.0
          %309 = vst [vmem:[%s295] sm:$0x1] 0.0
          %310 = vst [vmem:[%s301] sm:$0x1] 0.0
        $region40: #{tpu_custom_call.1} parent=27 // pred_fallthru
          _
        %v311 = vld [vmem:[%s256] sm:$0xff]
        %v312 = vld [vmem:[%s265] sm:$0xff]
        %v313 = vld [vmem:[%s289] sm:$0x1]
        %v314 = vmul.f32 %v311, %v312
        %v315 = vrot.slane %v314, 4
        %v316 = vadd.f32 %v314, %v315
        %v317 = vrot.slane %v316, 2
        %v318 = vadd.f32 %v316, %v317
        %v319 = vrot.slane %v318, 1
        %v320 = vadd.f32 %v318, %v319
        %v321 = vadd.f32 %v313, %v320
        %322 = vst [vmem:[%s289] sm:$0x1] %v321
        %v323 = vmul.f32 %v312, %v312
        %v324 = vld [vmem:[%s295] sm:$0x1]
        %v325 = vmul.f32 %v311, %v311
        %v326 = vadd.f32 %v325, %v323
        %v327 = vrot.slane %v326, 4
        %v328 = vadd.f32 %v326, %v327
        %v329 = vrot.slane %v328, 2
        %v330 = vadd.f32 %v328, %v329
        %v331 = vrot.slane %v330, 1
        %v332 = vadd.f32 %v330, %v331
        %v333 = vadd.f32 %v324, %v332
        %334 = vst [vmem:[%s295] sm:$0x1] %v333
        %v335 = vmax.f32 %v311, 0.001
        %v336 = vmin.f32 %v335, 0.999
        %v337 = vsub.f32 1.0, %v336
        %v338 = vlog2.pop %v336
        %v339 = vmul.f32 %v338, 0.6931472
        %v340 = vlog2.pop %v337
        %v341 = vmul.f32 %v340, 0.6931472
        %v342 = vmul.f32 %v337, %v337
        %v343 = vmul.f32 %v336, %v336
        %v344 = vmul.f32 %v312, %v342
        %v345 = vmul.f32 %v344, %v339
        %v346 = vsub.f32 1.0, %v312
        %v347 = vmul.f32 %v346, %v343
        %v348 = vmul.f32 %v347, %v341
        %v349 = vadd.f32 %v345, %v348
        %v350 = vsub.f32 0.0, %v349
        %v351 = vld [vmem:[%s301] sm:$0x1]
        %v352 = vrot.slane %v350, 4
        %v353 = vadd.f32 %v350, %v352
        %v354 = vrot.slane %v353, 2
        %v355 = vadd.f32 %v353, %v354
        %v356 = vrot.slane %v355, 1
        %v357 = vadd.f32 %v355, %v356
        %v358 = vadd.f32 %v351, %v357
        %359 = vst [vmem:[%s301] sm:$0x1] %v358
        %s360 = sand.u32 %s117, 1
        %s361 = scalar_lea.sflag [#allocation4], %s360
        %s362 = sand.u32 %s117, 1
        %s363 = scalar_lea.vmem [#allocation7], %s362
        %s364 = sand.u32 %s28, 1
        %s365 = scalar_lea.sflag [#allocation9], %s364
        %s366 = sand.u32 %s145, 1
        %s367 = scalar_lea.vmem [#allocation8], %s366
        %s368 = sand.u32 %s28, 1
        %s369 = scalar_lea.sflag [#allocation9], %s368
        %s370 = sand.u32 %s173, 1
        %s371 = scalar_lea.vmem [#allocation10], %s370
        // Predicated region
        $region41: #{tpu_custom_call.1} parent=27 // pred_check
          %p372 = pneg %p127
        $region42: #{tpu_custom_call.1} parent=27 // pred_check_branch
          %374 = sbr.rel (%p372) target = $region44
        $region43: #{tpu_custom_call.1} parent=27 // pred_region
          %s376 = ssub.s32 16, 16
          %377 = vsyncadd %s361, %s376
          %s378 = smul.addr %s33, 2
          %s379 = sadd.s32 %s34, %s378
          %s380 = smul.addr %s379, 16
          %s381 = scalar_lea.hbm %s2, %s380
          %s383 = sshll.u32 %s363, 4
          %s384 = int_to_ptr.vmem [resolvable:$true] %s383
          %386 = dma.vmem_to_hbm [thread:$0]  %s384, 16, %s381, %s361
        $region44: #{tpu_custom_call.1} parent=27 // pred_fallthru
          _
        // Predicated region
        $region45: #{tpu_custom_call.1} parent=27 // pred_check
          %p387 = pneg %p155
        $region46: #{tpu_custom_call.1} parent=27 // pred_check_branch
          %389 = sbr.rel (%p387) target = $region48
        $region47: #{tpu_custom_call.1} parent=27 // pred_region
          %s391 = ssub.s32 16, 16
          %392 = vsyncadd %s365, %s391
          %s393 = smul.addr %s33, 2
          %s394 = sadd.s32 %s34, %s393
          %s395 = smul.addr %s394, 16
          %s396 = scalar_lea.hbm %s3, %s395
          %s398 = sshll.u32 %s367, 4
          %s399 = int_to_ptr.vmem [resolvable:$true] %s398
          %401 = dma.vmem_to_hbm [thread:$0]  %s399, 16, %s396, %s365
        $region48: #{tpu_custom_call.1} parent=27 // pred_fallthru
          _
        // Predicated region
        $region49: #{tpu_custom_call.1} parent=27 // pred_check
          %p402 = pneg %p183
        $region50: #{tpu_custom_call.1} parent=27 // pred_check_branch
          %404 = sbr.rel (%p402) target = $region52
        $region51: #{tpu_custom_call.1} parent=27 // pred_region
          %s406 = ssub.s32 16, 16
          %407 = vsyncadd %s369, %s406
          %s408 = smul.addr %s33, 2
          %s409 = sadd.s32 %s34, %s408
          %s410 = smul.addr %s409, 16
          %s411 = scalar_lea.hbm %s4, %s410
          %s413 = sshll.u32 %s371, 4
          %s414 = int_to_ptr.vmem [resolvable:$true] %s413
          %416 = dma.vmem_to_hbm [thread:$0]  %s414, 16, %s411, %s369
        $region52: #{tpu_custom_call.1} parent=27 // pred_fallthru
          _
      $region28: #{tpu_custom_call.1} parent=5 // pred_fallthru
        _
      %p417 = scmp.le.s32.totalorder 2, %s23
      // Predicated region
      $region53: #{tpu_custom_call.1} parent=5 // pred_check
        %p418 = pneg %p417
      $region54: #{tpu_custom_call.1} parent=5 // pred_check_branch
        %420 = sbr.rel (%p418) target = $region56
      $region55: #{tpu_custom_call.1} parent=5 // pred_region
        %s421 = ssub.s32 %s23, 2
        // Predicated region
        $region57: #{tpu_custom_call.1} parent=55 // pred_check
          %p422 = pneg %p133
        $region58: #{tpu_custom_call.1} parent=55 // pred_check_branch
          %424 = sbr.rel (%p422) target = $region60
        $region59: #{tpu_custom_call.1} parent=55 // pred_region
          %s425 = sand.u32 %s118, 1
          %s426 = scalar_lea.sflag [#allocation4], %s425
          %s427 = sand.u32 %s118, 1
          %s428 = scalar_lea.vmem [#allocation7], %s427
          %429 = dma.done %s426, 16
        $region60: #{tpu_custom_call.1} parent=55 // pred_fallthru
          _
        // Predicated region
        $region61: #{tpu_custom_call.1} parent=55 // pred_check
          %p430 = pneg %p161
        $region62: #{tpu_custom_call.1} parent=55 // pred_check_branch
          %432 = sbr.rel (%p430) target = $region64
        $region63: #{tpu_custom_call.1} parent=55 // pred_region
          %s433 = sand.u32 %s29, 1
          %s434 = scalar_lea.sflag [#allocation9], %s433
          %s435 = sand.u32 %s146, 1
          %s436 = scalar_lea.vmem [#allocation8], %s435
          %437 = dma.done %s434, 16
        $region64: #{tpu_custom_call.1} parent=55 // pred_fallthru
          _
        // Predicated region
        $region65: #{tpu_custom_call.1} parent=55 // pred_check
          %p438 = pneg %p189
        $region66: #{tpu_custom_call.1} parent=55 // pred_check_branch
          %440 = sbr.rel (%p438) target = $region68
        $region67: #{tpu_custom_call.1} parent=55 // pred_region
          %s441 = sand.u32 %s29, 1
          %s442 = scalar_lea.sflag [#allocation9], %s441
          %s443 = sand.u32 %s174, 1
          %s444 = scalar_lea.vmem [#allocation10], %s443
          %445 = dma.done %s442, 16
        $region68: #{tpu_custom_call.1} parent=55 // pred_fallthru
          _
      $region56: #{tpu_custom_call.1} parent=5 // pred_fallthru
        _
    $region6: #{tpu_custom_call.1} parent=1 // loop_footer
      %s27 = sadd.s32 1, %s23
    $region7: #{tpu_custom_call.1} parent=1 // loop_footer_branch
      %22 = sbr.rel target = $region3
    $region8: #{tpu_custom_call.1} parent=1 // loop_exit
      _
    %446 = vsyncpa [#allocation3], 1
    %s447 = scalar_lea.sflag [#allocation3], 1
    %448 = vsyncpa %s447, 1
    %449 = vsyncpa [#allocation6], 1
    %s450 = scalar_lea.sflag [#allocation6], 1
    %451 = vsyncpa %s450, 1
    %452 = vsyncpa [#allocation4], 1
    %s453 = scalar_lea.sflag [#allocation4], 1
    %454 = vsyncpa %s453, 1
    %455 = vsyncpa [#allocation9], 1
    %s456 = scalar_lea.sflag [#allocation9], 1
    %457 = vsyncpa %s456, 1

</llo_original>
